<compile_context>
chip_gen: v5e
topology: v5e:2x2
jax: 0.10.0
libtpu: 0.0.40
codegen_flags: <defaults>
</compile_context>

<pallas_src>
import functools

import jax
import jax.numpy as jnp
from jax.experimental import pallas as pl
from jax.experimental.pallas import tpu as pltpu

LEAKY_SLOPE = 0.01  # PyTorch nn.LeakyReLU default negative_slope
NEG_BIG = -1e30     # mask value for padded output lanes (avoids inf-inf NaN)


def _round_up(n, m):
    return ((n + m - 1) // m) * m


def _mlp_softmax_kernel(x_ref, w1_ref, b1_ref, w2_ref, b2_ref, w3_ref, b3_ref,
                        o_ref):
    """fc1 -> (dropout p=0 = id) -> LeakyReLU -> fc2 -> LeakyReLU -> head ->
    softmax over the feature axis, for one (tb, c_in) batch tile.

    Padded output lanes carry a -1e30 bias (set host-side), so exp() of those
    lanes underflows to 0 and the softmax over the real out_dim is exact.
    """
    x = x_ref[...]  # bf16 (tb, c_in)

    # fc1 + LeakyReLU (bf16 operands, f32 accumulation on the MXU)
    h1 = jnp.dot(x, w1_ref[...], preferred_element_type=jnp.float32) + b1_ref[...]
    h1 = jnp.maximum(h1, LEAKY_SLOPE * h1)

    # fc2 + LeakyReLU
    h2 = jnp.dot(h1.astype(jnp.bfloat16), w2_ref[...],
                 preferred_element_type=jnp.float32) + b2_ref[...]
    h2 = jnp.maximum(h2, LEAKY_SLOPE * h2)

    # head (lane-dense, padded lanes masked via b3 = -1e30)
    logits = jnp.dot(h2.astype(jnp.bfloat16), w3_ref[...],
                     preferred_element_type=jnp.float32) + b3_ref[...]

    m = jnp.max(logits, axis=1, keepdims=True)
    e = jnp.exp(logits - m)
    denom = jnp.sum(e, axis=1, keepdims=True)
    # Exact reciprocal on a (tb, 1) vector is negligible; keeps rows summing
    # to 1 at f32 precision.
    o_ref[...] = (e * (1.0 / denom)).astype(o_ref.dtype)


@functools.partial(jax.jit, static_argnames=("block_b",))
def mymodel_forward(x, params, *, block_b=512):
    """x: (B, c_in) float32. params: (in,out) weights + (1,out) biases (f32)."""
    w1, b1 = params["w1"], params["b1"]
    w2, b2 = params["w2"], params["b2"]
    w3, b3 = params["w3"], params["b3"]

    B, c_in = x.shape
    hidden = w1.shape[1]
    out_dim = w3.shape[1]

    hid_pad = _round_up(hidden, 128)
    out_pad = _round_up(out_dim, 128)

    # Batch tile: multiple of 8, capped at block_b, and small enough that the
    # grid has >= 2 steps when B allows it (so v7x megacore gets both TCs).
    tb = min(block_b, max(8, _round_up(-(-B // 2), 8)))
    grid_b = pl.cdiv(B, tb)

    # --- host-side operand prep (all trace-time static shape decisions) -----
    # x: only cast; no channel/batch padding (full-extent last dim + ragged
    # last row tile handle non-128 / non-tb-multiple extents).
    xb = x.astype(jnp.bfloat16)

    # Weights bf16 for the MXU (half the resident VMEM / DMA); biases f32.
    # Zero-pad hidden to a lane-dense multiple of 128 only when needed; the
    # zero rows/cols + LeakyReLU(0)=0 keep the math exact.
    w1p = w1.astype(jnp.bfloat16)
    b1p = b1.astype(jnp.float32)
    w2p = w2.astype(jnp.bfloat16)
    b2p = b2.astype(jnp.float32)
    w3p = w3.astype(jnp.bfloat16)
    if hid_pad != hidden:
        w1p = jnp.zeros((c_in, hid_pad), jnp.bfloat16).at[:, :hidden].set(w1p)
        b1p = jnp.zeros((1, hid_pad), jnp.float32).at[:, :hidden].set(b1p)
        w2p = jnp.zeros((hid_pad, hid_pad), jnp.bfloat16).at[:hidden, :hidden].set(w2p)
        b2p = jnp.zeros((1, hid_pad), jnp.float32).at[:, :hidden].set(b2p)
        w3p = jnp.zeros((hid_pad, out_dim), jnp.bfloat16).at[:hidden, :].set(w3p)
    if out_pad != out_dim:
        w3p = jnp.zeros((hid_pad, out_pad), jnp.bfloat16).at[:, :out_dim].set(
            w3p if hid_pad != hidden else w3.astype(jnp.bfloat16))
        # Padded logit lanes get a huge negative bias -> exp() underflows to 0.
        b3p = jnp.full((1, out_pad), NEG_BIG, jnp.float32).at[:, :out_dim].set(
            b3.astype(jnp.float32))
    else:
        b3p = b3.astype(jnp.float32)

    # --- VMEM budget (explicit limit; weights double-buffered by default) ---
    weight_bytes = (c_in * hid_pad + hid_pad * hid_pad + hid_pad * out_pad) * 2
    bias_bytes = (2 * hid_pad + out_pad) * 4
    io_bytes = 2 * (tb * c_in * 2) + 2 * (tb * out_pad * 4)   # double-buffered
    interm_bytes = 2 * tb * hid_pad * 4 + 2 * tb * out_pad * 4
    need = 2 * (weight_bytes + bias_bytes) + io_bytes + interm_bytes
    vmem_limit = int(min(max(need + (4 << 20), 16 << 20), 120 << 20))

    flops = 2 * B * (c_in * hid_pad + hid_pad * hid_pad + hid_pad * out_pad)
    bytes_accessed = (B * c_in * 2 + weight_bytes + bias_bytes
                      + B * out_pad * 4)
    cost = pl.CostEstimate(flops=flops,
                           transcendentals=B * out_pad,
                           bytes_accessed=bytes_accessed)

    out_padded = pl.pallas_call(
        _mlp_softmax_kernel,
        out_shape=jax.ShapeDtypeStruct((B, out_pad), jnp.float32),
        grid=(grid_b,),
        in_specs=[
            pl.BlockSpec((tb, c_in), lambda i: (i, 0)),          # x tile
            pl.BlockSpec((c_in, hid_pad), lambda i: (0, 0)),     # w1 (resident)
            pl.BlockSpec((1, hid_pad), lambda i: (0, 0)),        # b1
            pl.BlockSpec((hid_pad, hid_pad), lambda i: (0, 0)),  # w2 (resident)
            pl.BlockSpec((1, hid_pad), lambda i: (0, 0)),        # b2
            pl.BlockSpec((hid_pad, out_pad), lambda i: (0, 0)),  # w3 (resident)
            pl.BlockSpec((1, out_pad), lambda i: (0, 0)),        # b3 (masked pad)
        ],
        out_specs=pl.BlockSpec((tb, out_pad), lambda i: (i, 0)),
        compiler_params=pltpu.CompilerParams(
            dimension_semantics=("parallel",),   # megacore sharding on v7x
            vmem_limit_bytes=vmem_limit),
        cost_estimate=cost,
    )(xb, w1p, b1p, w2p, b2p, w3p, b3p)

    return out_padded[:, :out_dim]


def init_params(key, in_channel, output_channel):
    """Deterministic init mimicking nn.Linear's U(-1/sqrt(fan_in), ...)."""
    hidden = in_channel * 4
    ks = jax.random.split(key, 6)

    def lin(kw, kb, fan_in, fan_out):
        bound = 1.0 / jnp.sqrt(float(fan_in))
        w = jax.random.uniform(kw, (fan_in, fan_out), jnp.float32, -bound, bound)
        b = jax.random.uniform(kb, (1, fan_out), jnp.float32, -bound, bound)
        return w, b

    w1, b1 = lin(ks[0], ks[1], in_channel, hidden)
    w2, b2 = lin(ks[2], ks[3], hidden, hidden)
    w3, b3 = lin(ks[4], ks[5], hidden, output_channel)
    return {"w1": w1, "b1": b1, "w2": w2, "b2": b2, "w3": w3, "b3": b3}


def _reference_forward(x, p):
    """Pure-JAX reference using the same bf16 operand rounding as the kernel."""
    bf = lambda a: a.astype(jnp.bfloat16).astype(jnp.float32)
    h1 = bf(x) @ bf(p["w1"]) + p["b1"]
    h1 = jnp.maximum(h1, LEAKY_SLOPE * h1)
    h2 = bf(h1) @ bf(p["w2"]) + p["b2"]
    h2 = jnp.maximum(h2, LEAKY_SLOPE * h2)
    logits = bf(h2) @ bf(p["w3"]) + p["b3"]
    return jax.nn.softmax(logits, axis=1)


if __name__ == "__main__":
    key = jax.random.PRNGKey(0)
    k_x, k_p = jax.random.split(key)

    batch = 8
    in_channel = 32          # -> hidden = 128
    output_channel = 16

    x = jax.random.normal(k_x, (batch, in_channel), jnp.float32)
    params = init_params(k_p, in_channel, output_channel)

    out = mymodel_forward(x, params)
    out = jax.block_until_ready(out)

    ref = _reference_forward(x, params)
    assert out.shape == (batch, output_channel)
    # bf16 matmul operands (f32 accumulation) -> few-1e-3 tolerance.
    assert jnp.allclose(out, ref, atol=5e-3, rtol=5e-3), "mismatch vs reference"
    # exact normalization -> rows sum to 1 at f32 precision
    assert jnp.allclose(jnp.sum(out, axis=1), 1.0, atol=1e-4)

    print("KERNEL_OK")
</pallas_src>

<mosaic_0001>
module attributes {stable_mosaic.version = 11 : i64} {
  func.func @_mlp_softmax_kernel(%arg0: i32, %arg1: memref<8x32xbf16, #tpu.memory_space<vmem>>, %arg2: memref<32x128xbf16, #tpu.memory_space<vmem>>, %arg3: memref<1x128xf32, #tpu.memory_space<vmem>>, %arg4: memref<128x128xbf16, #tpu.memory_space<vmem>>, %arg5: memref<1x128xf32, #tpu.memory_space<vmem>>, %arg6: memref<128x128xbf16, #tpu.memory_space<vmem>>, %arg7: memref<1x128xf32, #tpu.memory_space<vmem>>, %arg8: memref<8x128xf32, #tpu.memory_space<vmem>>) attributes {dimension_semantics = [#tpu.dimension_semantics<parallel>], iteration_bounds = array<i64: 1>, scalar_prefetch = 0 : i64, scratch_operands = 0 : i64, tpu.core_type = #tpu.core_type<tc>, window_params = [{transform_indices = @transform_0, window_bounds = array<i64: 8, 32>}, {pipeline_mode = #tpu.pipeline_mode<synchronous>, transform_indices = @transform_1, window_bounds = array<i64: 32, 128>}, {pipeline_mode = #tpu.pipeline_mode<synchronous>, transform_indices = @transform_2, window_bounds = array<i64: 1, 128>}, {pipeline_mode = #tpu.pipeline_mode<synchronous>, transform_indices = @transform_3, window_bounds = array<i64: 128, 128>}, {pipeline_mode = #tpu.pipeline_mode<synchronous>, transform_indices = @transform_4, window_bounds = array<i64: 1, 128>}, {pipeline_mode = #tpu.pipeline_mode<synchronous>, transform_indices = @transform_5, window_bounds = array<i64: 128, 128>}, {pipeline_mode = #tpu.pipeline_mode<synchronous>, transform_indices = @transform_6, window_bounds = array<i64: 1, 128>}, {transform_indices = @transform_7, window_bounds = array<i64: 8, 128>}]} {
    %c0 = arith.constant 0 : index
    %c0_0 = arith.constant 0 : index
    %0 = vector.load %arg1[%c0, %c0_0] : memref<8x32xbf16, #tpu.memory_space<vmem>>, vector<8x32xbf16>
    %c0_1 = arith.constant 0 : index
    %c0_2 = arith.constant 0 : index
    %1 = vector.load %arg2[%c0_1, %c0_2] : memref<32x128xbf16, #tpu.memory_space<vmem>>, vector<32x128xbf16>
    %cst = arith.constant dense<0.000000e+00> : vector<8x128xf32>
    %2 = tpu.matmul %0, %1, %cst {dimension_numbers = #tpu.dot_dimension_numbers<[1], [0], [0], [1], [0, 0, 1, 1], [], []>} : vector<8x32xbf16>, vector<32x128xbf16>, vector<8x128xf32> -> vector<8x128xf32>
    %c0_3 = arith.constant 0 : index
    %c0_4 = arith.constant 0 : index
    %3 = vector.load %arg3[%c0_3, %c0_4] : memref<1x128xf32, #tpu.memory_space<vmem>>, vector<1x128xf32>
    %4 = vector.broadcast %3 : vector<1x128xf32> to vector<8x128xf32>
    %5 = arith.addf %2, %4 : vector<8x128xf32>
    %cst_5 = arith.constant 0.00999999977 : f32
    %6 = vector.broadcast %cst_5 : f32 to vector<8x128xf32>
    %7 = arith.mulf %6, %5 : vector<8x128xf32>
    %8 = arith.maximumf %5, %7 : vector<8x128xf32>
    %9 = arith.truncf %8 : vector<8x128xf32> to vector<8x128xbf16>
    %c0_6 = arith.constant 0 : index
    %c0_7 = arith.constant 0 : index
    %10 = vector.load %arg4[%c0_6, %c0_7] : memref<128x128xbf16, #tpu.memory_space<vmem>>, vector<128x128xbf16>
    %cst_8 = arith.constant dense<0.000000e+00> : vector<8x128xf32>
    %11 = tpu.matmul %9, %10, %cst_8 {dimension_numbers = #tpu.dot_dimension_numbers<[1], [0], [0], [1], [0, 0, 1, 1], [], []>} : vector<8x128xbf16>, vector<128x128xbf16>, vector<8x128xf32> -> vector<8x128xf32>
    %c0_9 = arith.constant 0 : index
    %c0_10 = arith.constant 0 : index
    %12 = vector.load %arg5[%c0_9, %c0_10] : memref<1x128xf32, #tpu.memory_space<vmem>>, vector<1x128xf32>
    %13 = vector.broadcast %12 : vector<1x128xf32> to vector<8x128xf32>
    %14 = arith.addf %11, %13 : vector<8x128xf32>
    %cst_11 = arith.constant 0.00999999977 : f32
    %15 = vector.broadcast %cst_11 : f32 to vector<8x128xf32>
    %16 = arith.mulf %15, %14 : vector<8x128xf32>
    %17 = arith.maximumf %14, %16 : vector<8x128xf32>
    %18 = arith.truncf %17 : vector<8x128xf32> to vector<8x128xbf16>
    %c0_12 = arith.constant 0 : index
    %c0_13 = arith.constant 0 : index
    %19 = vector.load %arg6[%c0_12, %c0_13] : memref<128x128xbf16, #tpu.memory_space<vmem>>, vector<128x128xbf16>
    %cst_14 = arith.constant dense<0.000000e+00> : vector<8x128xf32>
    %20 = tpu.matmul %18, %19, %cst_14 {dimension_numbers = #tpu.dot_dimension_numbers<[1], [0], [0], [1], [0, 0, 1, 1], [], []>} : vector<8x128xbf16>, vector<128x128xbf16>, vector<8x128xf32> -> vector<8x128xf32>
    %c0_15 = arith.constant 0 : index
    %c0_16 = arith.constant 0 : index
    %21 = vector.load %arg7[%c0_15, %c0_16] : memref<1x128xf32, #tpu.memory_space<vmem>>, vector<1x128xf32>
    %22 = vector.broadcast %21 : vector<1x128xf32> to vector<8x128xf32>
    %23 = arith.addf %20, %22 : vector<8x128xf32>
    %cst_17 = arith.constant dense<0xFF800000> : vector<8xf32>
    %24 = vector.multi_reduction <maximumf>, %23, %cst_17 [1] : vector<8x128xf32> to vector<8xf32>
    %25 = vector.shape_cast %24 : vector<8xf32> to vector<8x1xf32>
    %26 = vector.broadcast %25 : vector<8x1xf32> to vector<8x128xf32>
    %27 = arith.subf %23, %26 : vector<8x128xf32>
    %28 = math.exp %27 : vector<8x128xf32>
    %cst_18 = arith.constant dense<0.000000e+00> : vector<8xf32>
    %29 = vector.multi_reduction <add>, %28, %cst_18 [1] : vector<8x128xf32> to vector<8xf32>
    %30 = vector.shape_cast %29 : vector<8xf32> to vector<8x1xf32>
    %cst_19 = arith.constant 1.000000e+00 : f32
    %31 = vector.broadcast %cst_19 : f32 to vector<8x1xf32>
    %32 = arith.divf %31, %30 : vector<8x1xf32>
    %33 = vector.broadcast %32 : vector<8x1xf32> to vector<8x128xf32>
    %34 = arith.mulf %28, %33 : vector<8x128xf32>
    %c0_20 = arith.constant 0 : index
    %c0_21 = arith.constant 0 : index
    %35 = vector.load %arg8[%c0_20, %c0_21] : memref<8x128xf32, #tpu.memory_space<vmem>>, vector<8x128xf32>
    tpu.vector_store %arg8[%c0_20, %c0_21], %34 {strides = array<i32>} : memref<8x128xf32, #tpu.memory_space<vmem>>, vector<8x128xf32>,
    return
  }
  func.func @transform_0(%arg0: i32) -> (i32, i32) {
    %c0_i32 = arith.constant 0 : i32
    %c0_i32_0 = arith.constant 0 : i32
    return %arg0, %c0_i32 : i32, i32
  }
  func.func @transform_1(%arg0: i32) -> (i32, i32) {
    %c0_i32 = arith.constant 0 : i32
    %c0_i32_0 = arith.constant 0 : i32
    %c0_i32_1 = arith.constant 0 : i32
    return %c0_i32, %c0_i32_0 : i32, i32
  }
  func.func @transform_2(%arg0: i32) -> (i32, i32) {
    %c0_i32 = arith.constant 0 : i32
    %c0_i32_0 = arith.constant 0 : i32
    %c0_i32_1 = arith.constant 0 : i32
    return %c0_i32, %c0_i32_0 : i32, i32
  }
  func.func @transform_3(%arg0: i32) -> (i32, i32) {
    %c0_i32 = arith.constant 0 : i32
    %c0_i32_0 = arith.constant 0 : i32
    %c0_i32_1 = arith.constant 0 : i32
    return %c0_i32, %c0_i32_0 : i32, i32
  }
  func.func @transform_4(%arg0: i32) -> (i32, i32) {
    %c0_i32 = arith.constant 0 : i32
    %c0_i32_0 = arith.constant 0 : i32
    %c0_i32_1 = arith.constant 0 : i32
    return %c0_i32, %c0_i32_0 : i32, i32
  }
  func.func @transform_5(%arg0: i32) -> (i32, i32) {
    %c0_i32 = arith.constant 0 : i32
    %c0_i32_0 = arith.constant 0 : i32
    %c0_i32_1 = arith.constant 0 : i32
    return %c0_i32, %c0_i32_0 : i32, i32
  }
  func.func @transform_6(%arg0: i32) -> (i32, i32) {
    %c0_i32 = arith.constant 0 : i32
    %c0_i32_0 = arith.constant 0 : i32
    %c0_i32_1 = arith.constant 0 : i32
    return %c0_i32, %c0_i32_0 : i32, i32
  }
  func.func @transform_7(%arg0: i32) -> (i32, i32) {
    %c0_i32 = arith.constant 0 : i32
    %c0_i32_0 = arith.constant 0 : i32
    return %arg0, %c0_i32 : i32, i32
  }
}

</mosaic_0001>

<llo_original>
// kernel: mymodel_forward.1
$region0: #{mymodel_forward.1}
  #allocation0 [shape = 'u32[]', space=smem, size = 0x4, offset = 0x4, fixed_abs, tag = 'smem constant byte address 0x4 - core index']
  #allocation1 [shape = 'u32[72,128]{1,0:T(1,128)}', space=vmem, size = 0x9000, scoped, tag = 'internal scratch']
  %s0 = inlined_call_operand.vmem [shape: bf16[8,32], index: 0, kind: input, shape index: {}]
  %s1 = inlined_call_operand.vmem [shape: bf16[32,128], index: 1, kind: input, shape index: {}]
  %s2 = inlined_call_operand.vmem [shape: f32[1,128], index: 2, kind: input, shape index: {}]
  %s3 = inlined_call_operand.vmem [shape: bf16[128,128], index: 3, kind: input, shape index: {}]
  %s4 = inlined_call_operand.vmem [shape: f32[1,128], index: 4, kind: input, shape index: {}]
  %s5 = inlined_call_operand.vmem [shape: bf16[128,128], index: 5, kind: input, shape index: {}]
  %s6 = inlined_call_operand.vmem [shape: f32[1,128], index: 6, kind: input, shape index: {}]
  %s7 = inlined_call_operand.hbm [shape: f32[8,128], index: 7, kind: output, shape index: {}]
  %s8 = sld [smem:[#allocation0]]
  $region38: #{mymodel_forward.1} parent=0
    _
  %s10 = ssub.s32 1, %s8
  %s11 = scalar_select 0, %s10, %s8
  $region1: #{mymodel_forward.1} parent=0
    #allocation2 [shape = 'u8[4096]{0}', space=vmem, size = 0x1000, scoped, tag = 'output window, operand 0, single buffered']
    #allocation3 [shape = 's32[1]{0}', space=sflag, size = 0x4, scoped, tag = 'scoped memory for mymodel_forward.1']
    %12 = vsyncpa [#allocation3], 0
    // Predicated region
    $region2: #{mymodel_forward.1} parent=1 // pred_check
      _
    $region3: #{mymodel_forward.1} parent=1 // pred_check_branch
      %14 = sbr.rel (0) target = $region5
    $region4: #{mymodel_forward.1} parent=1 // pred_region
      _
    $region5: #{mymodel_forward.1} parent=1 // pred_fallthru
      _
    // Predicated region
    $region6: #{mymodel_forward.1} parent=1 // pred_check
      _
    $region7: #{mymodel_forward.1} parent=1 // pred_check_branch
      %16 = sbr.rel (0) target = $region9
    $region8: #{mymodel_forward.1} parent=1 // pred_region
      _
    $region9: #{mymodel_forward.1} parent=1 // pred_fallthru
      _
    // Predicated region
    $region10: #{mymodel_forward.1} parent=1 // pred_check
      _
    $region11: #{mymodel_forward.1} parent=1 // pred_check_branch
      %18 = sbr.rel (0) target = $region13
    $region12: #{mymodel_forward.1} parent=1 // pred_region
      _
    $region13: #{mymodel_forward.1} parent=1 // pred_fallthru
      _
    // Predicated region
    $region14: #{mymodel_forward.1} parent=1 // pred_check
      _
    $region15: #{mymodel_forward.1} parent=1 // pred_check_branch
      %20 = sbr.rel (0) target = $region17
    $region16: #{mymodel_forward.1} parent=1 // pred_region
      _
    $region17: #{mymodel_forward.1} parent=1 // pred_fallthru
      _
    // Predicated region
    $region18: #{mymodel_forward.1} parent=1 // pred_check
      _
    $region19: #{mymodel_forward.1} parent=1 // pred_check_branch
      %22 = sbr.rel (0) target = $region21
    $region20: #{mymodel_forward.1} parent=1 // pred_region
      _
    $region21: #{mymodel_forward.1} parent=1 // pred_fallthru
      _
    // Predicated region
    $region22: #{mymodel_forward.1} parent=1 // pred_check
      _
    $region23: #{mymodel_forward.1} parent=1 // pred_check_branch
      %24 = sbr.rel (0) target = $region25
    $region24: #{mymodel_forward.1} parent=1 // pred_region
      _
    $region25: #{mymodel_forward.1} parent=1 // pred_fallthru
      _
    // Predicated region
    $region26: #{mymodel_forward.1} parent=1 // pred_check
      _
    $region27: #{mymodel_forward.1} parent=1 // pred_check_branch
      %26 = sbr.rel (0) target = $region29
    $region28: #{mymodel_forward.1} parent=1 // pred_region
      _
    $region29: #{mymodel_forward.1} parent=1 // pred_fallthru
      _
    %v28 = vld [vmem:[%s0] sm:$0xf]
    %v29 = vld [vmem:[%s1] sm:$0xf]
    %v30 = vld [vmem:[%s1 + $0x4] sm:$0xf]
    %v31 = vld [vmem:[%s1 + $0x8] sm:$0xf]
    %v32 = vld [vmem:[%s1 + $0xc] sm:$0xf]
    %v33 = vld [vmem:[%s2] sm:$0x1]
    %v35 = vperm.slane %v33, 0
    %v41 = vunpack.c.l.b16 %v29
    %v42 = vunpack.c.l.b16 %v30
    %v43 = vunpack.c.l.b16 %v31
    %v44 = vunpack.c.l.b16 %v32
    %v45 = vpack.c.b16 %v42, %v41
    %v46 = vpack.c.b16 %v44, %v43
    %vm49 = vcmask 261120
    %v51 = vsel %vm49, %v28, 0
    %53 = vmatpush.bf16.msra.mxu0 0
    %54 = vmatpush.bf16.msra.mxu0 0
    %55 = vmatpush.bf16.msra.mxu0 0
    %56 = vmatpush.bf16.msra.mxu0 0
    %57 = vmatpush.bf16.msra.mxu0 0
    %58 = vmatpush.bf16.msra.mxu0 0
    %59 = vmatpush.bf16.msra.mxu0 %v46
    %60 = vmatpush.bf16.msra.mxu0 %v45
    %61 = vmatmul.bf16.gmra.mxu0 %v51
    %v62 = vpop.f32.mrf.mxu0
    %v63 = vadd.f32 %v35, %v62
    %v64 = vpop.f32.mrf.mxu0
    %65 = vdwg.mxu0
    %v66 = vmul.f32 %v63, 0.01
    %v67 = vmax.f32 %v63, %v66
    %v68 = vpack.c.bf16 %v67, %v67
    %v69 = vld [vmem:[%s3] sm:$0xf]
    %v70 = vld [vmem:[%s3 + $0x4] sm:$0xf]
    %v71 = vld [vmem:[%s3 + $0x8] sm:$0xf]
    %v72 = vld [vmem:[%s3 + $0xc] sm:$0xf]
    %v73 = vld [vmem:[%s3 + $0x10] sm:$0xf]
    %v74 = vld [vmem:[%s3 + $0x14] sm:$0xf]
    %v75 = vld [vmem:[%s3 + $0x18] sm:$0xf]
    %v76 = vld [vmem:[%s3 + $0x1c] sm:$0xf]
    %v77 = vld [vmem:[%s3 + $0x20] sm:$0xf]
    %v78 = vld [vmem:[%s3 + $0x24] sm:$0xf]
    %v79 = vld [vmem:[%s3 + $0x28] sm:$0xf]
    %v80 = vld [vmem:[%s3 + $0x2c] sm:$0xf]
    %v81 = vld [vmem:[%s3 + $0x30] sm:$0xf]
    %v82 = vld [vmem:[%s3 + $0x34] sm:$0xf]
    %v83 = vld [vmem:[%s3 + $0x38] sm:$0xf]
    %v84 = vld [vmem:[%s3 + $0x3c] sm:$0xf]
    %v85 = vld [vmem:[%s4] sm:$0x1]
    %v87 = vperm.slane %v85, 0
    %v105 = vunpack.c.l.b16 %v69
    %v106 = vunpack.c.l.b16 %v70
    %v107 = vunpack.c.l.b16 %v71
    %v108 = vunpack.c.l.b16 %v72
    %v109 = vunpack.c.l.b16 %v73
    %v110 = vunpack.c.l.b16 %v74
    %v111 = vunpack.c.l.b16 %v75
    %v112 = vunpack.c.l.b16 %v76
    %v113 = vunpack.c.l.b16 %v77
    %v114 = vunpack.c.l.b16 %v78
    %v115 = vunpack.c.l.b16 %v79
    %v116 = vunpack.c.l.b16 %v80
    %v117 = vunpack.c.l.b16 %v81
    %v118 = vunpack.c.l.b16 %v82
    %v119 = vunpack.c.l.b16 %v83
    %v120 = vunpack.c.l.b16 %v84
    %v121 = vpack.c.b16 %v106, %v105
    %v122 = vpack.c.b16 %v108, %v107
    %v123 = vpack.c.b16 %v110, %v109
    %v124 = vpack.c.b16 %v112, %v111
    %v125 = vpack.c.b16 %v114, %v113
    %v126 = vpack.c.b16 %v116, %v115
    %v127 = vpack.c.b16 %v118, %v117
    %v128 = vpack.c.b16 %v120, %v119
    %137 = vmatpush.bf16.msra.mxu0 %v128
    %138 = vmatpush.bf16.msra.mxu0 %v127
    %139 = vmatpush.bf16.msra.mxu0 %v126
    %140 = vmatpush.bf16.msra.mxu0 %v125
    %141 = vmatpush.bf16.msra.mxu0 %v124
    %142 = vmatpush.bf16.msra.mxu0 %v123
    %143 = vmatpush.bf16.msra.mxu0 %v122
    %144 = vmatpush.bf16.msra.mxu0 %v121
    %145 = vmatmul.bf16.gmra.mxu0 %v68
    %v146 = vpop.f32.mrf.mxu0
    %v147 = vadd.f32 %v87, %v146
    %v148 = vpop.f32.mrf.mxu0
    %149 = vdwg.mxu0
    %v150 = vmul.f32 %v147, 0.01
    %v151 = vmax.f32 %v147, %v150
    %v152 = vpack.c.bf16 %v151, %v151
    %v153 = vld [vmem:[%s5] sm:$0xf]
    %v154 = vld [vmem:[%s5 + $0x4] sm:$0xf]
    %v155 = vld [vmem:[%s5 + $0x8] sm:$0xf]
    %v156 = vld [vmem:[%s5 + $0xc] sm:$0xf]
    %v157 = vld [vmem:[%s5 + $0x10] sm:$0xf]
    %v158 = vld [vmem:[%s5 + $0x14] sm:$0xf]
    %v159 = vld [vmem:[%s5 + $0x18] sm:$0xf]
    %v160 = vld [vmem:[%s5 + $0x1c] sm:$0xf]
    %v161 = vld [vmem:[%s5 + $0x20] sm:$0xf]
    %v162 = vld [vmem:[%s5 + $0x24] sm:$0xf]
    %v163 = vld [vmem:[%s5 + $0x28] sm:$0xf]
    %v164 = vld [vmem:[%s5 + $0x2c] sm:$0xf]
    %v165 = vld [vmem:[%s5 + $0x30] sm:$0xf]
    %v166 = vld [vmem:[%s5 + $0x34] sm:$0xf]
    %v167 = vld [vmem:[%s5 + $0x38] sm:$0xf]
    %v168 = vld [vmem:[%s5 + $0x3c] sm:$0xf]
    %v169 = vld [vmem:[%s6] sm:$0x1]
    %v171 = vperm.slane %v169, 0
    %v189 = vunpack.c.l.b16 %v153
    %v190 = vunpack.c.l.b16 %v154
    %v191 = vunpack.c.l.b16 %v155
    %v192 = vunpack.c.l.b16 %v156
    %v193 = vunpack.c.l.b16 %v157
    %v194 = vunpack.c.l.b16 %v158
    %v195 = vunpack.c.l.b16 %v159
    %v196 = vunpack.c.l.b16 %v160
    %v197 = vunpack.c.l.b16 %v161
    %v198 = vunpack.c.l.b16 %v162
    %v199 = vunpack.c.l.b16 %v163
    %v200 = vunpack.c.l.b16 %v164
    %v201 = vunpack.c.l.b16 %v165
    %v202 = vunpack.c.l.b16 %v166
    %v203 = vunpack.c.l.b16 %v167
    %v204 = vunpack.c.l.b16 %v168
    %v205 = vpack.c.b16 %v190, %v189
    %v206 = vpack.c.b16 %v192, %v191
    %v207 = vpack.c.b16 %v194, %v193
    %v208 = vpack.c.b16 %v196, %v195
    %v209 = vpack.c.b16 %v198, %v197
    %v210 = vpack.c.b16 %v200, %v199
    %v211 = vpack.c.b16 %v202, %v201
    %v212 = vpack.c.b16 %v204, %v203
    %221 = vmatpush.bf16.msra.mxu0 %v212
    %222 = vmatpush.bf16.msra.mxu0 %v211
    %223 = vmatpush.bf16.msra.mxu0 %v210
    %224 = vmatpush.bf16.msra.mxu0 %v209
    %225 = vmatpush.bf16.msra.mxu0 %v208
    %226 = vmatpush.bf16.msra.mxu0 %v207
    %227 = vmatpush.bf16.msra.mxu0 %v206
    %228 = vmatpush.bf16.msra.mxu0 %v205
    %229 = vmatmul.bf16.gmra.mxu0 %v152
    %v230 = vpop.f32.mrf.mxu0
    %v231 = vadd.f32 %v171, %v230
    %v232 = vpop.f32.mrf.mxu0
    %233 = vdwg.mxu0
    %234 = vmax.xlane.f32.xlu0 %v231
    %v235 = vpop.xlane.xlu0 %234
    %v236 = vsub.f32 %v231, %v235
    %v237 = vmul.f32 %v236, 1.442695
    %v238 = vpow.pop %v237
    %239 = vadd.xlane.f32.xlu0 %v238
    %v240 = vpop.xlane.xlu0 %239
    %v241 = vrcp.pop %v240
    %v242 = vmul.f32 %v240, %v241
    %v243 = vsub.f32 1.0, %v242
    %v244 = vmul.f32 %v241, %v243
    %v245 = vadd.f32 %v241, %v244
    %vm246 = vweird.f32 %v240
    %vm247 = vweird.f32 %v241
    %vm248 = vmor %vm246, %vm247
    %v249 = vsel %vm248, %v241, %v245
    %v250 = vand.u32 2147483647, %v240
    %vm251 = vcmp.eq.f32.partialorder %v250, 8.507059e+37
    %v252 = vand.u32 %v240, 2147483648
    %v253 = vor.u32 1.1754944e-38, %v252
    %v254 = vsel %vm251, %v253, %v249
    %v255 = vmul.f32 1.0, %v254
    %v256 = vmul.f32 %v238, %v255
    %257 = vst [vmem:[#allocation2] sm:$0xff] %v256
    // Predicated region
    $region30: #{mymodel_forward.1} parent=1 // pred_check
      _
    $region31: #{mymodel_forward.1} parent=1 // pred_check_branch
      %259 = sbr.rel (0) target = $region33
    $region32: #{mymodel_forward.1} parent=1 // pred_region
      %261 = vsyncadd [#allocation3], 0
      %s263 = sshll.u32 [#allocation2], 4
      %s264 = int_to_ptr.vmem [resolvable:$true] %s263
      %s265 = sshll.u32 %s7, 4
      %s266 = int_to_ptr.hbm [resolvable:$true] %s265
      %268 = dma.vmem_to_hbm [thread:$0]  %s264, 128, %s266, [#allocation3]
    $region33: #{mymodel_forward.1} parent=1 // pred_fallthru
      _
    // Predicated region
    $region34: #{mymodel_forward.1} parent=1 // pred_check
      _
    $region35: #{mymodel_forward.1} parent=1 // pred_check_branch
      %270 = sbr.rel (0) target = $region37
    $region36: #{mymodel_forward.1} parent=1 // pred_region
      %272 = dma.done [#allocation3], 128
    $region37: #{mymodel_forward.1} parent=1 // pred_fallthru
      _
    %273 = vsyncpa [#allocation3], 1

</llo_original>
